<compile_context>
chip_gen: v6e
topology: v6e:2x2x1
jax: 0.10.0
libtpu: 0.0.40
codegen_flags: <defaults>
</compile_context>

<pallas_src>
import jax
import jax.numpy as jnp
from jax.experimental import pallas as pl
from jax.experimental.pallas import tpu as pltpu


# -----------------------------------------------------------------------------
# Kernel
# -----------------------------------------------------------------------------
def time_mlp_kernel(t_ref, w1_ref, b1_ref, w2_ref, b2_ref, o_ref, h_ref):
    # Grid: (batch tile i, output-N tile n), n innermost.
    # First linear + SiLU only once per batch tile; reused across N tiles.
    @pl.when(pl.program_id(1) == 0)
    def _():
        h = jnp.dot(t_ref[...], w1_ref[...],
                    preferred_element_type=jnp.float32)        # MXU
        h = h + b1_ref[...]                                     # f32 bias (VPU)
        h = h * jax.nn.sigmoid(h)                               # SiLU, f32 (EUP)
        h_ref[...] = h.astype(h_ref.dtype)                      # stash in VMEM

    # Second linear on this N tile (MXU), f32 accumulation, f32 bias.
    y = jnp.dot(h_ref[...], w2_ref[...], preferred_element_type=jnp.float32)
    y = y + b2_ref[...]
    o_ref[...] = y.astype(o_ref.dtype)                          # lane-dense store


# -----------------------------------------------------------------------------
# Helpers
# -----------------------------------------------------------------------------
def _round_up(n: int, m: int) -> int:
    return ((n + m - 1) // m) * m


def _pick_n_tile(hp: int, pref: int) -> int:
    """Largest multiple of 128 that divides hp and is <= pref (hp % 128 == 0)."""
    pref = max(128, _round_up(pref, 128))
    if hp <= pref:
        return hp
    for cand in range(pref, 127, -128):
        if hp % cand == 0:
            return cand
    return 128


def prepare_time_embedding_params(w1, b1, w2, b2, *, matmul_dtype=jnp.bfloat16):
    """Pad + cast parameters ONCE (call at model init, not per step).

    w1: (time_dim, hidden); w2: (hidden, hidden); b1/b2: (hidden,) or (1, hidden).
    matmul_dtype casts only the MXU inputs (weights); bias/SiLU/accum stay f32.
    Use matmul_dtype=jnp.float32 if bit-exact f32 numerics are required.
    """
    time_dim, hidden = w1.shape
    assert w2.shape == (hidden, hidden)

    mm_dtype = jnp.dtype(matmul_dtype)
    kp = _round_up(time_dim, 8)                      # sublane-friendly K (no 128 pad)
    hp = _round_up(max(hidden, 128), 128)            # lane-dense hidden

    b1 = jnp.reshape(b1, (1, hidden)).astype(jnp.float32)
    b2 = jnp.reshape(b2, (1, hidden)).astype(jnp.float32)

    if (kp, hp) != (time_dim, hidden):
        w1_p = jnp.zeros((kp, hp), mm_dtype).at[:time_dim, :hidden].set(
            w1.astype(mm_dtype))
    else:
        w1_p = w1.astype(mm_dtype)
    if hp != hidden:
        w2_p = jnp.zeros((hp, hp), mm_dtype).at[:hidden, :hidden].set(
            w2.astype(mm_dtype))
        b1_p = jnp.zeros((1, hp), jnp.float32).at[:, :hidden].set(b1)
        b2_p = jnp.zeros((1, hp), jnp.float32).at[:, :hidden].set(b2)
    else:
        w2_p = w2.astype(mm_dtype)
        b1_p, b2_p = b1, b2

    return {
        "w1": w1_p, "b1": b1_p, "w2": w2_p, "b2": b2_p,
        "time_dim": time_dim, "hidden": hidden, "kp": kp, "hp": hp,
        "mm_dtype": mm_dtype,
    }


def time_embedding_apply(t, params, *, block_b: int = 256, block_n: int = 1024):
    """Apply the time MLP.  t: (B, time_dim) -> (B, hidden) in t.dtype."""
    B, time_dim = t.shape
    assert time_dim == params["time_dim"]
    hidden, kp, hp = params["hidden"], params["kp"], params["hp"]
    mm_dtype = params["mm_dtype"]
    out_dtype = t.dtype

    # Batch tiling (sublane multiple of 8); N tiling of the second matmul.
    bp0 = _round_up(max(B, 8), 8)
    tb = min(_round_up(block_b, 8), bp0)
    bp = _round_up(bp0, tb)
    tn = _pick_n_tile(hp, block_n)
    n_b, n_n = bp // tb, hp // tn

    # Pad / cast the activation only if needed (fuses under jit).
    if (bp, kp) != (B, time_dim) or t.dtype != mm_dtype:
        t_p = jnp.zeros((bp, kp), mm_dtype).at[:B, :time_dim].set(
            t.astype(mm_dtype))
    else:
        t_p = t

    w1_p, b1_p, w2_p, b2_p = params["w1"], params["b1"], params["w2"], params["b2"]

    # Resident (constant index_map) operands: single-buffer to save VMEM.
    resident = {"pipeline_mode": pl.Buffered(1)}
    w2_kw = resident if n_n == 1 else {}

    in_specs = [
        pl.BlockSpec((tb, kp), lambda i, n: (i, 0)),                 # t tile
        pl.BlockSpec((kp, hp), lambda i, n: (0, 0), **resident),     # w1 resident
        pl.BlockSpec((1, hp), lambda i, n: (0, 0), **resident),      # b1 resident
        pl.BlockSpec((hp, tn), lambda i, n: (0, n), **w2_kw),        # w2 N-tiled
        pl.BlockSpec((1, tn), lambda i, n: (0, n), **w2_kw),         # b2 N-tiled
    ]
    out_spec = pl.BlockSpec((tb, tn), lambda i, n: (i, n))

    # Conservative VMEM footprint estimate; only raise the scoped limit if the
    # default (16 MiB on v5e) would be exceeded.
    isz = jnp.dtype(mm_dtype).itemsize
    osz = jnp.dtype(out_dtype).itemsize
    w2_bufs = 1 if n_n == 1 else 2
    need = (kp * hp * isz + hp * 4
            + hp * tn * isz * w2_bufs + tn * 4 * w2_bufs
            + tb * kp * isz * 2 + tb * tn * osz * 2
            + tb * hp * isz)
    vmem_limit = None
    if need > (12 << 20):
        vmem_limit = min(int(need * 1.5) + (8 << 20), 96 << 20)

    cost = pl.CostEstimate(
        flops=2 * B * time_dim * hidden + 2 * B * hidden * hidden,
        transcendentals=B * hidden,
        bytes_accessed=(t_p.size * isz + w1_p.size * isz + w2_p.size * isz
                        + b1_p.size * 4 + b2_p.size * 4 + bp * hp * osz),
    )

    out_p = pl.pallas_call(
        time_mlp_kernel,
        out_shape=jax.ShapeDtypeStruct((bp, hp), out_dtype),
        grid=(n_b, n_n),
        in_specs=in_specs,
        out_specs=out_spec,
        scratch_shapes=[pltpu.VMEM((tb, hp), mm_dtype)],   # SiLU activations
        compiler_params=pltpu.CompilerParams(
            # TODO(synk): on v7x, pltpu.CORE_PARALLEL on the batch axis would
            # shard large-batch calls across both TensorCores.
            dimension_semantics=("parallel", "arbitrary"),
            vmem_limit_bytes=vmem_limit,
        ),
        cost_estimate=cost,
    )(t_p, w1_p, b1_p, w2_p, b2_p)

    # Slice only if padding actually happened (avoid a needless XLA copy).
    out = out_p
    if bp != B:
        out = out[:B]
    if hp != hidden:
        out = out[:, :hidden]
    return out


def time_embedding(t, w1, b1, w2, b2, *, matmul_dtype=jnp.bfloat16, **kw):
    """One-shot convenience wrapper (prepares params every call; prefer
    prepare_time_embedding_params + time_embedding_apply in real pipelines)."""
    params = prepare_time_embedding_params(w1, b1, w2, b2, matmul_dtype=matmul_dtype)
    return time_embedding_apply(t, params, **kw)


def reference(t, w1, b1, w2, b2):
    h = t @ w1 + jnp.reshape(b1, (1, -1))
    h = h * jax.nn.sigmoid(h)
    return h @ w2 + jnp.reshape(b2, (1, -1))


# -----------------------------------------------------------------------------
# Demo / correctness check
# -----------------------------------------------------------------------------
if __name__ == "__main__":
    batch, time_dim, hidden_dim = 8, 32, 64

    key = jax.random.PRNGKey(0)
    k_t, k_w1, k_b1, k_w2, k_b2 = jax.random.split(key, 5)

    t = jax.random.normal(k_t, (batch, time_dim), dtype=jnp.float32)

    # Deterministic synthetic parameters ((in, out) layout, i.e. PyTorch W.T).
    w1 = jax.random.normal(k_w1, (time_dim, hidden_dim), dtype=jnp.float32) * 0.05
    b1 = jax.random.normal(k_b1, (hidden_dim,), dtype=jnp.float32) * 0.01
    w2 = jax.random.normal(k_w2, (hidden_dim, hidden_dim), dtype=jnp.float32) * 0.05
    b2 = jax.random.normal(k_b2, (hidden_dim,), dtype=jnp.float32) * 0.01

    ref = reference(t, w1, b1, w2, b2)

    # 1) f32 MXU path: bit-tight check against the pure-JAX reference.
    params_f32 = prepare_time_embedding_params(w1, b1, w2, b2,
                                               matmul_dtype=jnp.float32)
    out_f32 = jax.jit(lambda x: time_embedding_apply(x, params_f32))(t)
    out_f32 = jax.block_until_ready(out_f32)
    assert out_f32.shape == (batch, hidden_dim)
    assert jnp.allclose(out_f32, ref, atol=1e-5, rtol=1e-5)

    # 2) Default bf16 MXU path (prepared once, applied under jit).
    params = prepare_time_embedding_params(w1, b1, w2, b2)
    out_bf16 = jax.jit(lambda x: time_embedding_apply(x, params))(t)
    out_bf16 = jax.block_until_ready(out_bf16)
    assert out_bf16.shape == (batch, hidden_dim)
    assert jnp.allclose(out_bf16.astype(jnp.float32), ref, atol=2e-2, rtol=2e-2)

    print("KERNEL_OK")
</pallas_src>

<mosaic_0001>
module attributes {stable_mosaic.version = 11 : i64} {
  func.func @time_mlp_kernel(%arg0: i32, %arg1: i32, %arg2: memref<8x32xf32, #tpu.memory_space<vmem>>, %arg3: memref<32x128xf32, #tpu.memory_space<vmem>>, %arg4: memref<1x128xf32, #tpu.memory_space<vmem>>, %arg5: memref<128x128xf32, #tpu.memory_space<vmem>>, %arg6: memref<1x128xf32, #tpu.memory_space<vmem>>, %arg7: memref<8x128xf32, #tpu.memory_space<vmem>>, %arg8: memref<8x128xf32, #tpu.memory_space<vmem>>) attributes {dimension_semantics = [#tpu.dimension_semantics<parallel>, #tpu.dimension_semantics<arbitrary>], iteration_bounds = array<i64: 1, 1>, scalar_prefetch = 0 : i64, scratch_operands = 1 : i64, tpu.core_type = #tpu.core_type<tc>, window_params = [{transform_indices = @transform_0, window_bounds = array<i64: 8, 32>}, {pipeline_mode = #tpu.pipeline_mode<synchronous>, transform_indices = @transform_1, window_bounds = array<i64: 32, 128>}, {pipeline_mode = #tpu.pipeline_mode<synchronous>, transform_indices = @transform_2, window_bounds = array<i64: 1, 128>}, {pipeline_mode = #tpu.pipeline_mode<synchronous>, transform_indices = @transform_3, window_bounds = array<i64: 128, 128>}, {pipeline_mode = #tpu.pipeline_mode<synchronous>, transform_indices = @transform_4, window_bounds = array<i64: 1, 128>}, {transform_indices = @transform_5, window_bounds = array<i64: 8, 128>}]} {
    %c0_i32 = arith.constant 0 : i32
    %0 = arith.cmpi eq, %arg1, %c0_i32 : i32
    %1 = arith.extui %0 : i1 to i32
    %c0_i32_0 = arith.constant 0 : i32
    %2 = arith.cmpi ne, %1, %c0_i32_0 : i32
    scf.if %2 {
      %c0_8 = arith.constant 0 : index
      %c0_9 = arith.constant 0 : index
      %10 = vector.load %arg2[%c0_8, %c0_9] : memref<8x32xf32, #tpu.memory_space<vmem>>, vector<8x32xf32>
      %c0_10 = arith.constant 0 : index
      %c0_11 = arith.constant 0 : index
      %11 = vector.load %arg3[%c0_10, %c0_11] : memref<32x128xf32, #tpu.memory_space<vmem>>, vector<32x128xf32>
      %cst_12 = arith.constant dense<0.000000e+00> : vector<8x128xf32>
      %12 = tpu.matmul %10, %11, %cst_12 {dimension_numbers = #tpu.dot_dimension_numbers<[1], [0], [0], [1], [0, 0, 1, 1], [], []>} : vector<8x32xf32>, vector<32x128xf32>, vector<8x128xf32> -> vector<8x128xf32>
      %c0_13 = arith.constant 0 : index
      %c0_14 = arith.constant 0 : index
      %13 = vector.load %arg4[%c0_13, %c0_14] : memref<1x128xf32, #tpu.memory_space<vmem>>, vector<1x128xf32>
      %14 = vector.broadcast %13 : vector<1x128xf32> to vector<8x128xf32>
      %15 = arith.addf %12, %14 : vector<8x128xf32>
      %16 = arith.negf %15 : vector<8x128xf32>
      %17 = math.exp %16 : vector<8x128xf32>
      %cst_15 = arith.constant 1.000000e+00 : f32
      %18 = vector.broadcast %cst_15 : f32 to vector<8x128xf32>
      %19 = arith.addf %18, %17 : vector<8x128xf32>
      %20 = arith.divf %18, %19 : vector<8x128xf32>
      %21 = arith.mulf %15, %20 : vector<8x128xf32>
      %c0_16 = arith.constant 0 : index
      %c0_17 = arith.constant 0 : index
      %22 = vector.load %arg8[%c0_16, %c0_17] : memref<8x128xf32, #tpu.memory_space<vmem>>, vector<8x128xf32>
      tpu.vector_store %arg8[%c0_16, %c0_17], %21 {strides = array<i32>} : memref<8x128xf32, #tpu.memory_space<vmem>>, vector<8x128xf32>,
    } else {
    }
    %c0 = arith.constant 0 : index
    %c0_1 = arith.constant 0 : index
    %3 = vector.load %arg8[%c0, %c0_1] : memref<8x128xf32, #tpu.memory_space<vmem>>, vector<8x128xf32>
    %c0_2 = arith.constant 0 : index
    %c0_3 = arith.constant 0 : index
    %4 = vector.load %arg5[%c0_2, %c0_3] : memref<128x128xf32, #tpu.memory_space<vmem>>, vector<128x128xf32>
    %cst = arith.constant dense<0.000000e+00> : vector<8x128xf32>
    %5 = tpu.matmul %3, %4, %cst {dimension_numbers = #tpu.dot_dimension_numbers<[1], [0], [0], [1], [0, 0, 1, 1], [], []>} : vector<8x128xf32>, vector<128x128xf32>, vector<8x128xf32> -> vector<8x128xf32>
    %c0_4 = arith.constant 0 : index
    %c0_5 = arith.constant 0 : index
    %6 = vector.load %arg6[%c0_4, %c0_5] : memref<1x128xf32, #tpu.memory_space<vmem>>, vector<1x128xf32>
    %7 = vector.broadcast %6 : vector<1x128xf32> to vector<8x128xf32>
    %8 = arith.addf %5, %7 : vector<8x128xf32>
    %c0_6 = arith.constant 0 : index
    %c0_7 = arith.constant 0 : index
    %9 = vector.load %arg7[%c0_6, %c0_7] : memref<8x128xf32, #tpu.memory_space<vmem>>, vector<8x128xf32>
    tpu.vector_store %arg7[%c0_6, %c0_7], %8 {strides = array<i32>} : memref<8x128xf32, #tpu.memory_space<vmem>>, vector<8x128xf32>,
    return
  }
  func.func @transform_0(%arg0: i32, %arg1: i32) -> (i32, i32) {
    %c0_i32 = arith.constant 0 : i32
    %c0_i32_0 = arith.constant 0 : i32
    return %arg0, %c0_i32 : i32, i32
  }
  func.func @transform_1(%arg0: i32, %arg1: i32) -> (i32, i32) {
    %c0_i32 = arith.constant 0 : i32
    %c0_i32_0 = arith.constant 0 : i32
    %c0_i32_1 = arith.constant 0 : i32
    return %c0_i32, %c0_i32_0 : i32, i32
  }
  func.func @transform_2(%arg0: i32, %arg1: i32) -> (i32, i32) {
    %c0_i32 = arith.constant 0 : i32
    %c0_i32_0 = arith.constant 0 : i32
    %c0_i32_1 = arith.constant 0 : i32
    return %c0_i32, %c0_i32_0 : i32, i32
  }
  func.func @transform_3(%arg0: i32, %arg1: i32) -> (i32, i32) {
    %c0_i32 = arith.constant 0 : i32
    %c0_i32_0 = arith.constant 0 : i32
    return %c0_i32, %arg1 : i32, i32
  }
  func.func @transform_4(%arg0: i32, %arg1: i32) -> (i32, i32) {
    %c0_i32 = arith.constant 0 : i32
    %c0_i32_0 = arith.constant 0 : i32
    return %c0_i32, %arg1 : i32, i32
  }
  func.func @transform_5(%arg0: i32, %arg1: i32) -> (i32, i32) {
    %c0_i32 = arith.constant 0 : i32
    return %arg0, %arg1 : i32, i32
  }
}

</mosaic_0001>

<llo_original>
// kernel: _lambda_.1
$region0: #{_lambda_.1}
  #allocation0 [shape = 'u32[]', space=smem, size = 0x4, offset = 0x4, fixed_abs, tag = 'smem constant byte address 0x4 - core index']
  #allocation1 [shape = 'u32[144,128]{1,0:T(1,128)}', space=vmem, size = 0x12000, scoped, tag = 'internal scratch']
  #allocation2 [shape = 'f32[8,128]{1,0:T(8,128)}', space=vmem, size = 0x1000, scoped, tag = 'scratch operand']
  %s0 = inlined_call_operand.hbm [shape: f32[8,32], index: 0, kind: input, shape index: {}]
  %s1 = inlined_call_operand.hbm [shape: f32[32,128], index: 1, kind: input, shape index: {}]
  %s2 = inlined_call_operand.vmem [shape: f32[1,128], index: 2, kind: input, shape index: {}]
  %s3 = inlined_call_operand.hbm [shape: f32[128,128], index: 3, kind: input, shape index: {}]
  %s4 = inlined_call_operand.vmem [shape: f32[1,128], index: 4, kind: input, shape index: {}]
  %s5 = inlined_call_operand.hbm [shape: f32[8,128], index: 5, kind: output, shape index: {}]
  %s6 = sld [smem:[#allocation0]]
  $region46: #{_lambda_.1} parent=0
    _
  %s8 = ssub.s32 1, %s6
  %s9 = scalar_select 0, %s8, %s6
  $region1: #{_lambda_.1} parent=0
    #allocation3 [shape = 'u8[4096]{0}', space=vmem, size = 0x1000, scoped, tag = 'input window, operand 0, single buffered']
    #allocation4 [shape = 's32[1]{0}', space=sflag, size = 0x4, scoped, tag = 'scoped memory for _lambda_.1']
    #allocation5 [shape = 's32[1]{0}', space=sflag, size = 0x4, scoped, tag = 'scoped memory for _lambda_.1']
    #allocation6 [shape = 'u8[16384]{0}', space=vmem, size = 0x4000, scoped, tag = 'input window, operand 1, single buffered']
    #allocation7 [shape = 's32[1]{0}', space=sflag, size = 0x4, scoped, tag = 'scoped memory for _lambda_.1']
    #allocation8 [shape = 'u8[65536]{0}', space=vmem, size = 0x10000, scoped, tag = 'input window, operand 3, single buffered']
    #allocation9 [shape = 'u8[4096]{0}', space=vmem, size = 0x1000, scoped, tag = 'output window, operand 0, single buffered']
    %10 = vsyncpa [#allocation4], 0
    %11 = vsyncpa [#allocation7], 0
    %12 = vsyncpa [#allocation5], 0
    // Predicated region
    $region2: #{_lambda_.1} parent=1 // pred_check
      _
    $region3: #{_lambda_.1} parent=1 // pred_check_branch
      %14 = sbr.rel (0) target = $region5
    $region4: #{_lambda_.1} parent=1 // pred_region
      %s16 = ssub.s32 128, 128
      %17 = vsyncadd [#allocation4], %s16
      %s19 = sshll.u32 [#allocation3], 4
      %s20 = int_to_ptr.vmem [resolvable:$true] %s19
      %22 = dma.hbm_to_vmem [thread:$0]  %s0, 128, %s20, [#allocation4]
    $region5: #{_lambda_.1} parent=1 // pred_fallthru
      _
    // Predicated region
    $region6: #{_lambda_.1} parent=1 // pred_check
      _
    $region7: #{_lambda_.1} parent=1 // pred_check_branch
      %24 = sbr.rel (0) target = $region9
    $region8: #{_lambda_.1} parent=1 // pred_region
      %s26 = ssub.s32 512, 512
      %27 = vsyncadd [#allocation7], %s26
      %s28 = sshll.u32 [#allocation6], 4
      %s29 = int_to_ptr.vmem [resolvable:$true] %s28
      %34 = dma.hbm_to_vmem [thread:$0]  %s1, 512, %s29, [#allocation7], 128, 128, 8
    $region9: #{_lambda_.1} parent=1 // pred_fallthru
      _
    // Predicated region
    $region10: #{_lambda_.1} parent=1 // pred_check
      _
    $region11: #{_lambda_.1} parent=1 // pred_check_branch
      %36 = sbr.rel (0) target = $region13
    $region12: #{_lambda_.1} parent=1 // pred_region
      _
    $region13: #{_lambda_.1} parent=1 // pred_fallthru
      _
    // Predicated region
    $region14: #{_lambda_.1} parent=1 // pred_check
      _
    $region15: #{_lambda_.1} parent=1 // pred_check_branch
      %38 = sbr.rel (0) target = $region17
    $region16: #{_lambda_.1} parent=1 // pred_region
      %s40 = ssub.s32 2048, 2048
      %41 = vsyncadd [#allocation7], %s40
      %s42 = sshll.u32 [#allocation8], 4
      %s43 = int_to_ptr.vmem [resolvable:$true] %s42
      %48 = dma.hbm_to_vmem [thread:$0]  %s3, 2048, %s43, [#allocation7], 128, 128, 8
    $region17: #{_lambda_.1} parent=1 // pred_fallthru
      _
    // Predicated region
    $region18: #{_lambda_.1} parent=1 // pred_check
      _
    $region19: #{_lambda_.1} parent=1 // pred_check_branch
      %50 = sbr.rel (0) target = $region21
    $region20: #{_lambda_.1} parent=1 // pred_region
      _
    $region21: #{_lambda_.1} parent=1 // pred_fallthru
      _
    // Predicated region
    $region22: #{_lambda_.1} parent=1 // pred_check
      _
    $region23: #{_lambda_.1} parent=1 // pred_check_branch
      %52 = sbr.rel (0) target = $region25
    $region24: #{_lambda_.1} parent=1 // pred_region
      %53 = dma.done [#allocation4], 128
    $region25: #{_lambda_.1} parent=1 // pred_fallthru
      _
    // Predicated region
    $region26: #{_lambda_.1} parent=1 // pred_check
      _
    $region27: #{_lambda_.1} parent=1 // pred_check_branch
      %55 = sbr.rel (0) target = $region29
    $region28: #{_lambda_.1} parent=1 // pred_region
      %56 = dma.done [#allocation7], 512
    $region29: #{_lambda_.1} parent=1 // pred_fallthru
      _
    // Predicated region
    $region30: #{_lambda_.1} parent=1 // pred_check
      _
    $region31: #{_lambda_.1} parent=1 // pred_check_branch
      %58 = sbr.rel (0) target = $region33
    $region32: #{_lambda_.1} parent=1 // pred_region
      %59 = dma.done [#allocation7], 2048
    $region33: #{_lambda_.1} parent=1 // pred_fallthru
      _
    %p60 = scmp.eq.s32.totalorder 0, 0
    // Predicated region
    $region34: #{_lambda_.1} parent=1 // pred_check
      %p61 = pneg %p60
    $region35: #{_lambda_.1} parent=1 // pred_check_branch
      %63 = sbr.rel (%p61) target = $region37
    $region36: #{_lambda_.1} parent=1 // pred_region
      %v64 = vld [vmem:[#allocation3] sm:$0xff]
      %v65 = vld [vmem:[#allocation6] sm:$0xff]
      %v66 = vld [vmem:[#allocation6 + $0x8] sm:$0xff]
      %v67 = vld [vmem:[#allocation6 + $0x10] sm:$0xff]
      %v68 = vld [vmem:[#allocation6 + $0x18] sm:$0xff]
      %v69 = vld [vmem:[%s2] sm:$0x1]
      %v71 = vlaneseq
      %v72 = vshrl.u32 %v71, 7
      %v73 = vsub.s32 0, %v72
      %v74 = vrot.slane %v69, %v73
      %vm76 = vcmask 261120
      %v78 = vsel %vm76, %v64, 0
      %80 = vmatprep.subr.mxu0 0.0
      %81 = vmatpush1.msra.mxu0 0.0
      %82 = vmatprep.subr.mxu0 0.0
      %83 = vmatpush1.msra.mxu0 0.0
      %84 = vmatprep.subr.mxu0 0.0
      %85 = vmatpush1.msra.mxu0 0.0
      %86 = vmatprep.subr.mxu0 0.0
      %87 = vmatpush1.msra.mxu0 0.0
      %88 = vmatprep.subr.mxu0 0.0
      %89 = vmatpush1.msra.mxu0 0.0
      %90 = vmatprep.subr.mxu0 0.0
      %91 = vmatpush1.msra.mxu0 0.0
      %92 = vmatprep.subr.mxu0 0.0
      %93 = vmatpush1.msra.mxu0 0.0
      %94 = vmatprep.subr.mxu0 0.0
      %95 = vmatpush1.msra.mxu0 0.0
      %96 = vmatprep.subr.mxu0 0.0
      %97 = vmatpush1.msra.mxu0 0.0
      %98 = vmatprep.subr.mxu0 0.0
      %99 = vmatpush1.msra.mxu0 0.0
      %100 = vmatprep.subr.mxu0 0.0
      %101 = vmatpush1.msra.mxu0 0.0
      %102 = vmatprep.subr.mxu0 0.0
      %103 = vmatpush1.msra.mxu0 0.0
      %104 = vmatprep.subr.mxu0 0.0
      %105 = vmatpush1.msra.mxu0 %v68
      %106 = vmatprep.subr.mxu0 0.0
      %107 = vmatpush1.msra.mxu0 %v67
      %108 = vmatprep.subr.mxu0 0.0
      %109 = vmatpush1.msra.mxu0 %v66
      %110 = vmatprep.subr.mxu0 0.0
      %111 = vmatpush1.msra.mxu0 %v65
      %112 = vmatprep.subr.mxu0 0.0
      %113 = vmatpush2.msra.mxu0 0.0
      %114 = vmatprep.subr.mxu0 0.0
      %115 = vmatpush2.msra.mxu0 0.0
      %116 = vmatprep.subr.mxu0 0.0
      %117 = vmatpush2.msra.mxu0 0.0
      %118 = vmatprep.subr.mxu0 0.0
      %119 = vmatpush2.msra.mxu0 0.0
      %120 = vmatprep.subr.mxu0 0.0
      %121 = vmatpush2.msra.mxu0 0.0
      %122 = vmatprep.subr.mxu0 0.0
      %123 = vmatpush2.msra.mxu0 0.0
      %124 = vmatprep.subr.mxu0 0.0
      %125 = vmatpush2.msra.mxu0 0.0
      %126 = vmatprep.subr.mxu0 0.0
      %127 = vmatpush2.msra.mxu0 0.0
      %128 = vmatprep.subr.mxu0 0.0
      %129 = vmatpush2.msra.mxu0 0.0
      %130 = vmatprep.subr.mxu0 0.0
      %131 = vmatpush2.msra.mxu0 0.0
      %132 = vmatprep.subr.mxu0 0.0
      %133 = vmatpush2.msra.mxu0 0.0
      %134 = vmatprep.subr.mxu0 0.0
      %135 = vmatpush2.msra.mxu0 0.0
      %136 = vmatprep.subr.mxu0 0.0
      %137 = vmatpush2.msra.mxu0 0.0
      %138 = vmatprep.subr.mxu0 0.0
      %139 = vmatpush2.msra.mxu0 0.0
      %140 = vmatprep.subr.mxu0 0.0
      %141 = vmatpush2.msra.mxu0 0.0
      %142 = vmatprep.subr.mxu0 0.0
      %143 = vmatpush2.msra.mxu0 0.0
      %144 = vmatprep.mubr.f32.mxu0 0.0
      %145 = vmatmul.mubr.f32.gmra.mxu0 %v78
      %v146 = vpop.f32.mrf.mxu0
      %v147 = vadd.f32 %v74, %v146
      %v148 = vpop.f32.mrf.mxu0
      %149 = vdwg.mxu0
      %v150 = vxor.u32 %v147, 2147483648
      %v151 = vmul.f32 %v150, 1.442695
      %v152 = vpow.pop %v151
      %v153 = vadd.f32 %v152, 1.0
      %v154 = vrcp.pop %v153
      %v155 = vmul.f32 1.0, %v154
      %v156 = vmul.f32 %v147, %v155
      %157 = vst [vmem:[#allocation2] sm:$0xff] %v156
    $region37: #{_lambda_.1} parent=1 // pred_fallthru
      _
    %v158 = vld [vmem:[#allocation2] sm:$0xff]
    %v159 = vld [vmem:[#allocation8] sm:$0xff]
    %v160 = vld [vmem:[#allocation8 + $0x8] sm:$0xff]
    %v161 = vld [vmem:[#allocation8 + $0x10] sm:$0xff]
    %v162 = vld [vmem:[#allocation8 + $0x18] sm:$0xff]
    %v163 = vld [vmem:[#allocation8 + $0x20] sm:$0xff]
    %v164 = vld [vmem:[#allocation8 + $0x28] sm:$0xff]
    %v165 = vld [vmem:[#allocation8 + $0x30] sm:$0xff]
    %v166 = vld [vmem:[#allocation8 + $0x38] sm:$0xff]
    %v167 = vld [vmem:[#allocation8 + $0x40] sm:$0xff]
    %v168 = vld [vmem:[#allocation8 + $0x48] sm:$0xff]
    %v169 = vld [vmem:[#allocation8 + $0x50] sm:$0xff]
    %v170 = vld [vmem:[#allocation8 + $0x58] sm:$0xff]
    %v171 = vld [vmem:[#allocation8 + $0x60] sm:$0xff]
    %v172 = vld [vmem:[#allocation8 + $0x68] sm:$0xff]
    %v173 = vld [vmem:[#allocation8 + $0x70] sm:$0xff]
    %v174 = vld [vmem:[#allocation8 + $0x78] sm:$0xff]
    %v175 = vld [vmem:[%s4] sm:$0x1]
    %v177 = vlaneseq
    %v178 = vshrl.u32 %v177, 7
    %v179 = vsub.s32 0, %v178
    %v180 = vrot.slane %v175, %v179
    %182 = vmatprep.subr.mxu0 0.0
    %183 = vmatpush1.msra.mxu0 %v174
    %184 = vmatprep.subr.mxu0 0.0
    %185 = vmatpush1.msra.mxu0 %v173
    %186 = vmatprep.subr.mxu0 0.0
    %187 = vmatpush1.msra.mxu0 %v172
    %188 = vmatprep.subr.mxu0 0.0
    %189 = vmatpush1.msra.mxu0 %v171
    %190 = vmatprep.subr.mxu0 0.0
    %191 = vmatpush1.msra.mxu0 %v170
    %192 = vmatprep.subr.mxu0 0.0
    %193 = vmatpush1.msra.mxu0 %v169
    %194 = vmatprep.subr.mxu0 0.0
    %195 = vmatpush1.msra.mxu0 %v168
    %196 = vmatprep.subr.mxu0 0.0
    %197 = vmatpush1.msra.mxu0 %v167
    %198 = vmatprep.subr.mxu0 0.0
    %199 = vmatpush1.msra.mxu0 %v166
    %200 = vmatprep.subr.mxu0 0.0
    %201 = vmatpush1.msra.mxu0 %v165
    %202 = vmatprep.subr.mxu0 0.0
    %203 = vmatpush1.msra.mxu0 %v164
    %204 = vmatprep.subr.mxu0 0.0
    %205 = vmatpush1.msra.mxu0 %v163
    %206 = vmatprep.subr.mxu0 0.0
    %207 = vmatpush1.msra.mxu0 %v162
    %208 = vmatprep.subr.mxu0 0.0
    %209 = vmatpush1.msra.mxu0 %v161
    %210 = vmatprep.subr.mxu0 0.0
    %211 = vmatpush1.msra.mxu0 %v160
    %212 = vmatprep.subr.mxu0 0.0
    %213 = vmatpush1.msra.mxu0 %v159
    %214 = vmatprep.subr.mxu0 0.0
    %215 = vmatpush2.msra.mxu0 0.0
    %216 = vmatprep.subr.mxu0 0.0
    %217 = vmatpush2.msra.mxu0 0.0
    %218 = vmatprep.subr.mxu0 0.0
    %219 = vmatpush2.msra.mxu0 0.0
    %220 = vmatprep.subr.mxu0 0.0
    %221 = vmatpush2.msra.mxu0 0.0
    %222 = vmatprep.subr.mxu0 0.0
    %223 = vmatpush2.msra.mxu0 0.0
    %224 = vmatprep.subr.mxu0 0.0
    %225 = vmatpush2.msra.mxu0 0.0
    %226 = vmatprep.subr.mxu0 0.0
    %227 = vmatpush2.msra.mxu0 0.0
    %228 = vmatprep.subr.mxu0 0.0
    %229 = vmatpush2.msra.mxu0 0.0
    %230 = vmatprep.subr.mxu0 0.0
    %231 = vmatpush2.msra.mxu0 0.0
    %232 = vmatprep.subr.mxu0 0.0
    %233 = vmatpush2.msra.mxu0 0.0
    %234 = vmatprep.subr.mxu0 0.0
    %235 = vmatpush2.msra.mxu0 0.0
    %236 = vmatprep.subr.mxu0 0.0
    %237 = vmatpush2.msra.mxu0 0.0
    %238 = vmatprep.subr.mxu0 0.0
    %239 = vmatpush2.msra.mxu0 0.0
    %240 = vmatprep.subr.mxu0 0.0
    %241 = vmatpush2.msra.mxu0 0.0
    %242 = vmatprep.subr.mxu0 0.0
    %243 = vmatpush2.msra.mxu0 0.0
    %244 = vmatprep.subr.mxu0 0.0
    %245 = vmatpush2.msra.mxu0 0.0
    %246 = vmatprep.mubr.f32.mxu0 0.0
    %247 = vmatmul.mubr.f32.gmra.mxu0 %v158
    %v248 = vpop.f32.mrf.mxu0
    %v249 = vadd.f32 %v180, %v248
    %v250 = vpop.f32.mrf.mxu0
    %251 = vdwg.mxu0
    %252 = vst [vmem:[#allocation9] sm:$0xff] %v249
    // Predicated region
    $region38: #{_lambda_.1} parent=1 // pred_check
      _
    $region39: #{_lambda_.1} parent=1 // pred_check_branch
      %254 = sbr.rel (0) target = $region41
    $region40: #{_lambda_.1} parent=1 // pred_region
      %s256 = ssub.s32 128, 128
      %257 = vsyncadd [#allocation5], %s256
      %s259 = sshll.u32 [#allocation9], 4
      %s260 = int_to_ptr.vmem [resolvable:$true] %s259
      %262 = dma.vmem_to_hbm [thread:$0]  %s260, 128, %s5, [#allocation5]
    $region41: #{_lambda_.1} parent=1 // pred_fallthru
      _
    // Predicated region
    $region42: #{_lambda_.1} parent=1 // pred_check
      _
    $region43: #{_lambda_.1} parent=1 // pred_check_branch
      %264 = sbr.rel (0) target = $region45
    $region44: #{_lambda_.1} parent=1 // pred_region
      %265 = dma.done [#allocation5], 128
    $region45: #{_lambda_.1} parent=1 // pred_fallthru
      _
    %266 = vsyncpa [#allocation4], 1
    %267 = vsyncpa [#allocation7], 1
    %268 = vsyncpa [#allocation5], 1

</llo_original>
